<compile_context>
chip_gen: v5e
topology: v5e:2x2
jax: 0.10.0
libtpu: 0.0.40
codegen_flags: <defaults>
</compile_context>

<pallas_src>
import functools

import jax
import jax.numpy as jnp
from jax.experimental import pallas as pl
from jax.experimental.pallas import tpu as pltpu

LANE = 128
SUBLANE = 8
# (8192, 128) f32 block = 4 MiB; double-buffered in+out = 16 MiB VMEM (fits v5e/v6e/v7x).
MAX_BLOCK_ROWS = 8192
_PALLAS_MIN_ELEMS = SUBLANE * LANE  # below one vreg tile, plain XLA is strictly better


def _requant_kernel(x_ref, o_ref, *, eff_scale, eff_zp, clip_inf, clip_sup):
    """Elementwise integer-requantization hot path (pure VPU, mem-bound)."""
    out = x_ref[...].astype(jnp.float32)
    if eff_scale != 1.0:          # folded at trace time
        out = out * eff_scale
    if eff_zp != 0.0:             # folded at trace time
        out = out + eff_zp
    out = jnp.floor(out)
    out = jnp.clip(out, clip_inf, clip_sup)
    o_ref[...] = out.astype(o_ref.dtype)


class ONNXAddPallas:
    """JAX/Pallas re-implementation of plinio ONNXAdd.

    Parameters are initialized deterministically exactly like the PyTorch
    __init__ (scale=1, shift=0, zero point / clip bounds derived from the
    quantizer precision and signedness).
    """

    def __init__(self, precision: int = 8, scale_bit: int = 24,
                 shift_pos: int = 24, signed: bool = False,
                 max_block_rows: int = MAX_BLOCK_ROWS):
        self.scale_bit = scale_bit
        self.shift_pos = shift_pos
        self.signed = signed
        self.precision = precision
        self.max_block_rows = int(max_block_rows)
        if self.signed:
            self.clip_inf = float(-(2 ** (precision - 1)))
            self.clip_sup = float(2 ** (precision - 1) - 1)
            # `--2 ** (p-1)` in the PyTorch source evaluates to +2**(p-1)
            self._zero_point = float(2 ** (precision - 1))
        else:
            self.clip_inf = 0.0
            self.clip_sup = float(2 ** precision - 1)
            self._zero_point = 0.0
        # Defaults set in __init__ (the ONNX exporter later overwrites these via
        # _integer_approximation; forward itself only uses the stored values).
        self.scale = 1.0
        self.shift = 0.0

    # ------------------------------------------------------------------ #

    def __call__(self, x: jnp.ndarray) -> jnp.ndarray:
        orig_shape = x.shape
        orig_dtype = x.dtype

        # Fold the constants once, at trace time.
        inv_pow2 = 1.0 / (2.0 ** float(self.shift))
        eff_scale = float(self.scale) * inv_pow2
        eff_zp = float(self._zero_point) * inv_pow2
        clip_inf = float(self.clip_inf)
        clip_sup = float(self.clip_sup)

        flat = x.reshape(-1)
        n = flat.shape[0]

        # Tiny tensors: pallas_call fixed overhead dwarfs the work; let XLA fuse it.
        if n < _PALLAS_MIN_ELEMS:
            out = flat.astype(jnp.float32)
            if eff_scale != 1.0:
                out = out * eff_scale
            if eff_zp != 0.0:
                out = out + eff_zp
            out = jnp.clip(jnp.floor(out), clip_inf, clip_sup)
            return out.astype(orig_dtype).reshape(orig_shape)

        # Lane-dense (rows, 128) view.  Pad only to a multiple of 128 lanes, and only
        # when strictly required (conv-style activation counts are usually aligned).
        pad = (-n) % LANE
        if pad:
            flat = jnp.pad(flat, (0, pad))
        rows = (n + pad) // LANE
        x2 = flat.reshape(rows, LANE)

        # Largest row block that fits comfortably in VMEM.  If the whole slab is smaller
        # than one block, use a full-array block (block shape == array shape is legal
        # even when rows is not a multiple of 8).
        block_rows = rows if rows <= self.max_block_rows else self.max_block_rows
        grid = (pl.cdiv(rows, block_rows),)   # partial last block masked by Pallas

        kernel = functools.partial(
            _requant_kernel,
            eff_scale=eff_scale,
            eff_zp=eff_zp,
            clip_inf=clip_inf,
            clip_sup=clip_sup,
        )

        out2 = pl.pallas_call(
            kernel,
            out_shape=jax.ShapeDtypeStruct((rows, LANE), orig_dtype),
            grid_spec=pltpu.PrefetchScalarGridSpec(
                num_scalar_prefetch=0,
                grid=grid,
                in_specs=[pl.BlockSpec((block_rows, LANE), lambda i: (i, 0))],
                out_specs=pl.BlockSpec((block_rows, LANE), lambda i: (i, 0)),
            ),
            compiler_params=pltpu.CompilerParams(
                dimension_semantics=("parallel",)),  # shards across both TCs on v7x
        )(x2)

        out_flat = out2.reshape(-1)
        if pad:
            out_flat = out_flat[:n]
        return out_flat.reshape(orig_shape)
        # TODO(synk): optionally emit int8/uint8 output (values are already floored and
        # clipped to an 8-bit range) to quarter store-side HBM traffic, if the consumer
        # accepts integer activations instead of the PyTorch float tensor.


def _reference(x, mod: ONNXAddPallas):
    out = mod.scale * x.astype(jnp.float32)
    out = (out + mod._zero_point) / (2.0 ** mod.shift)
    out = jnp.floor(out)
    out = jnp.clip(out, mod.clip_inf, mod.clip_sup)
    return out.astype(x.dtype)


if __name__ == "__main__":
    key = jax.random.PRNGKey(0)
    k1, k2 = jax.random.split(key)

    # 1) Small NCHW input consistent with a conv-style activation tensor (Pallas path,
    #    single full-array block).  Unsigned 8-bit quantizer: clip to [0, 255].
    x = jax.random.uniform(k1, (2, 4, 16, 16), dtype=jnp.float32,
                           minval=-50.0, maxval=300.0)
    mod_u = ONNXAddPallas(precision=8, signed=False)
    out = jax.block_until_ready(mod_u(x))
    ref = _reference(x, mod_u)
    assert out.shape == x.shape and out.dtype == x.dtype
    assert jnp.allclose(out, ref), "Pallas output mismatch vs reference (unsigned)"

    # 2) Signed config with a non-trivial scale/shift (as the ONNX exporter would set),
    #    using a small block-row override so the multi-block (grid > 1) path — including
    #    the masked partial last block — is exercised at a small shape.
    x_big = jax.random.uniform(k2, (4, 16, 32, 36), dtype=jnp.float32,
                               minval=-400.0, maxval=400.0)
    mod_s = ONNXAddPallas(precision=8, signed=True, max_block_rows=64)
    mod_s.scale = 3.0
    mod_s.shift = 4.0
    out_big = jax.block_until_ready(mod_s(x_big))
    ref_big = _reference(x_big, mod_s)
    assert out_big.shape == x_big.shape and out_big.dtype == x_big.dtype
    assert jnp.allclose(out_big, ref_big), "Pallas output mismatch vs reference (signed)"

    print("KERNEL_OK")
</pallas_src>

<mosaic_0001>
module attributes {stable_mosaic.version = 11 : i64} {
  func.func @_requant_kernel(%arg0: i32, %arg1: memref<16x128xf32, #tpu.memory_space<vmem>>, %arg2: memref<16x128xf32, #tpu.memory_space<vmem>>) attributes {dimension_semantics = [#tpu.dimension_semantics<parallel>], iteration_bounds = array<i64: 1>, scalar_prefetch = 0 : i64, scratch_operands = 0 : i64, tpu.core_type = #tpu.core_type<tc>, window_params = [{transform_indices = @transform_0, window_bounds = array<i64: 16, 128>}, {transform_indices = @transform_1, window_bounds = array<i64: 16, 128>}]} {
    %c0 = arith.constant 0 : index
    %c0_0 = arith.constant 0 : index
    %0 = vector.load %arg1[%c0, %c0_0] : memref<16x128xf32, #tpu.memory_space<vmem>>, vector<16x128xf32>
    %1 = math.floor %0 : vector<16x128xf32>
    %cst = arith.constant 0.000000e+00 : f32
    %cst_1 = arith.constant 2.550000e+02 : f32
    %2 = vector.broadcast %cst : f32 to vector<16x128xf32>
    %3 = arith.maximumf %2, %1 : vector<16x128xf32>
    %4 = vector.broadcast %cst_1 : f32 to vector<16x128xf32>
    %5 = arith.minimumf %4, %3 : vector<16x128xf32>
    %c0_2 = arith.constant 0 : index
    %c0_3 = arith.constant 0 : index
    %6 = vector.load %arg2[%c0_2, %c0_3] : memref<16x128xf32, #tpu.memory_space<vmem>>, vector<16x128xf32>
    tpu.vector_store %arg2[%c0_2, %c0_3], %5 {strides = array<i32>} : memref<16x128xf32, #tpu.memory_space<vmem>>, vector<16x128xf32>,
    return
  }
  func.func @transform_0(%arg0: i32) -> (i32, i32) {
    %c0_i32 = arith.constant 0 : i32
    %c0_i32_0 = arith.constant 0 : i32
    return %arg0, %c0_i32 : i32, i32
  }
  func.func @transform_1(%arg0: i32) -> (i32, i32) {
    %c0_i32 = arith.constant 0 : i32
    %c0_i32_0 = arith.constant 0 : i32
    return %arg0, %c0_i32 : i32, i32
  }
}

</mosaic_0001>

<llo_original>
// kernel: tpu_custom_call.1
$region0: #{tpu_custom_call.1}
  #allocation0 [shape = 'u32[]', space=smem, size = 0x4, offset = 0x4, fixed_abs, tag = 'smem constant byte address 0x4 - core index']
  #allocation1 [shape = 'u32[72,128]{1,0:T(1,128)}', space=vmem, size = 0x9000, scoped, tag = 'internal scratch']
  %s0 = inlined_call_operand.hbm [shape: f32[16,128], index: 0, kind: input, shape index: {}]
  %s1 = inlined_call_operand.hbm [shape: f32[16,128], index: 1, kind: output, shape index: {}]
  %s2 = sld [smem:[#allocation0]]
  $region18: #{tpu_custom_call.1} parent=0
    _
  %s4 = ssub.s32 1, %s2
  %s5 = scalar_select 0, %s4, %s2
  $region1: #{tpu_custom_call.1} parent=0
    #allocation2 [shape = 'u8[8192]{0}', space=vmem, size = 0x2000, scoped, tag = 'input window, operand 0, single buffered']
    #allocation3 [shape = 's32[1]{0}', space=sflag, size = 0x4, scoped, tag = 'scoped memory for tpu_custom_call.1']
    #allocation4 [shape = 's32[1]{0}', space=sflag, size = 0x4, scoped, tag = 'scoped memory for tpu_custom_call.1']
    #allocation5 [shape = 'u8[8192]{0}', space=vmem, size = 0x2000, scoped, tag = 'output window, operand 0, single buffered']
    %6 = vsyncpa [#allocation3], 0
    %7 = vsyncpa [#allocation4], 0
    // Predicated region
    $region2: #{tpu_custom_call.1} parent=1 // pred_check
      _
    $region3: #{tpu_custom_call.1} parent=1 // pred_check_branch
      %9 = sbr.rel (0) target = $region5
    $region4: #{tpu_custom_call.1} parent=1 // pred_region
      %11 = vsyncadd [#allocation3], 0
      %s12 = sshll.u32 %s0, 4
      %s13 = int_to_ptr.hbm [resolvable:$true] %s12
      %s14 = sshll.u32 [#allocation2], 4
      %s15 = int_to_ptr.vmem [resolvable:$true] %s14
      %20 = dma.hbm_to_vmem [thread:$0]  %s13, 256, %s15, [#allocation3], 128, 128, 8
    $region5: #{tpu_custom_call.1} parent=1 // pred_fallthru
      _
    // Predicated region
    $region6: #{tpu_custom_call.1} parent=1 // pred_check
      _
    $region7: #{tpu_custom_call.1} parent=1 // pred_check_branch
      %22 = sbr.rel (0) target = $region9
    $region8: #{tpu_custom_call.1} parent=1 // pred_region
      %24 = dma.done [#allocation3], 256
    $region9: #{tpu_custom_call.1} parent=1 // pred_fallthru
      _
    %v25 = vld [vmem:[#allocation2] sm:$0xff]
    %v26 = vld [vmem:[#allocation2 + $0x8] sm:$0xff]
    %v27 = vfloor.f32 %v25
    %v28 = vfloor.f32 %v26
    %v29 = vmax.f32 %v27, 0.0
    %v30 = vmax.f32 %v28, 0.0
    %v31 = vmin.f32 %v29, 255.0
    %v32 = vmin.f32 %v30, 255.0
    %33 = vst [vmem:[#allocation5] sm:$0xff] %v31
    %34 = vst [vmem:[#allocation5 + $0x8] sm:$0xff] %v32
    // Predicated region
    $region10: #{tpu_custom_call.1} parent=1 // pred_check
      _
    $region11: #{tpu_custom_call.1} parent=1 // pred_check_branch
      %36 = sbr.rel (0) target = $region13
    $region12: #{tpu_custom_call.1} parent=1 // pred_region
      %38 = vsyncadd [#allocation4], 0
      %s39 = sshll.u32 [#allocation5], 4
      %s40 = int_to_ptr.vmem [resolvable:$true] %s39
      %s41 = sshll.u32 %s1, 4
      %s42 = int_to_ptr.hbm [resolvable:$true] %s41
      %47 = dma.vmem_to_hbm [thread:$0]  %s40, 256, %s42, [#allocation4], 128, 128, 8
    $region13: #{tpu_custom_call.1} parent=1 // pred_fallthru
      _
    // Predicated region
    $region14: #{tpu_custom_call.1} parent=1 // pred_check
      _
    $region15: #{tpu_custom_call.1} parent=1 // pred_check_branch
      %49 = sbr.rel (0) target = $region17
    $region16: #{tpu_custom_call.1} parent=1 // pred_region
      %51 = dma.done [#allocation4], 256
    $region17: #{tpu_custom_call.1} parent=1 // pred_fallthru
      _
    %52 = vsyncpa [#allocation3], 1
    %53 = vsyncpa [#allocation4], 1

</llo_original>
